<compile_context>
chip_gen: v6e
topology: v6e:2x2x1
jax: 0.10.0
libtpu: 0.0.40
codegen_flags: <defaults>
</compile_context>

<pallas_src>
import functools

import jax
import jax.numpy as jnp
from jax import lax
from jax.experimental import pallas as pl
from jax.experimental.pallas import tpu as pltpu

# action_space is None in this setup -> scale=1.0, bias=0.0 (module default).
ACTION_SCALE = 1.0
ACTION_BIAS = 0.0

_PANEL = 512  # inner batch-lane panel width (bounds vreg live ranges)


def _policy_kernel(x_ref, w1_ref, b1_ref, w2_ref, b2_ref, w3_ref, b3_ref, out_ref,
                   *, panel, n_panels, action_scale, action_bias):
    """Feature-major fused MLP: out = tanh(W3·relu(W2·relu(W1·x + b1) + b2) + b3)."""
    w1 = w1_ref[...]
    w2 = w2_ref[...]
    w3 = w3_ref[...]
    b1 = b1_ref[...].astype(jnp.float32)
    b2 = b2_ref[...].astype(jnp.float32)
    b3 = b3_ref[...].astype(jnp.float32)
    mxu_dtype = w1.dtype  # bf16 if weights were pre-cast outside the kernel

    def compute(x):
        # x: [num_inputs, panel]  (batch on lanes, features on sublanes)
        if x.dtype != mxu_dtype:
            x = x.astype(mxu_dtype)
        h = jnp.dot(w1, x, preferred_element_type=jnp.float32) + b1
        h = jnp.maximum(h, 0.0)                       # relu (VPU, f32)
        if mxu_dtype != jnp.float32:
            h = h.astype(mxu_dtype)
        h = jnp.dot(w2, h, preferred_element_type=jnp.float32) + b2
        h = jnp.maximum(h, 0.0)                       # relu (VPU, f32)
        if mxu_dtype != jnp.float32:
            h = h.astype(mxu_dtype)
        m = jnp.dot(w3, h, preferred_element_type=jnp.float32) + b3
        mean = jnp.tanh(m)                            # EUP slot
        # *1.0 / +0.0 are folded out at trace time (action_space=None case).
        if action_scale != 1.0:
            mean = mean * action_scale
        if action_bias != 0.0:
            mean = mean + action_bias
        return mean.astype(out_ref.dtype)

    if n_panels == 1:
        out_ref[...] = compute(x_ref[...])
    else:
        def body(p, carry):
            start = pl.multiple_of(p * panel, panel)
            out_ref[:, pl.ds(start, panel)] = compute(x_ref[:, pl.ds(start, panel)])
            return carry
        lax.fori_loop(0, n_panels, body, 0, unroll=True)


def _choose_tiling(batch, tile_b):
    """Snap tile_b to a legal lane size and pick the inner panel width."""
    tile_b = int(tile_b)
    if batch <= tile_b:
        tile_b = batch                                  # single full-extent block
    else:
        tile_b = max(128, (tile_b // 128) * 128)        # lane dim multiple of 128
    if tile_b >= _PANEL and tile_b % _PANEL == 0:
        panel = _PANEL
    else:
        panel = tile_b
    return tile_b, panel, tile_b // panel


def deterministic_policy_forward_fm(state_fm, params, *, tile_b=8192, megacore=False):
    """Core kernel call: feature-major state [num_inputs, B] -> mean [num_actions, B].

    Use this directly if the surrounding pipeline can keep data feature-major
    (avoids the wrapper transposes entirely).
    """
    w1, b1, w2, b2, w3, b3 = params
    num_inputs, batch = state_fm.shape
    hidden_dim = w1.shape[0]
    num_actions = w3.shape[0]

    tile_b, panel, n_panels = _choose_tiling(batch, tile_b)
    grid = (pl.cdiv(batch, tile_b),)   # ragged last block handled by Pallas masking

    def resident(p):  # weights / biases stay in VMEM across all grid steps
        return pl.BlockSpec(p.shape, lambda i: (0, 0))

    in_specs = [
        pl.BlockSpec((num_inputs, tile_b), lambda i: (0, i)),
        resident(w1), resident(b1),
        resident(w2), resident(b2),
        resident(w3), resident(b3),
    ]
    out_spec = pl.BlockSpec((num_actions, tile_b), lambda i: (0, i))

    param_bytes = sum(int(p.size) * p.dtype.itemsize for p in params)
    cost = pl.CostEstimate(
        flops=2 * batch * (num_inputs * hidden_dim
                           + hidden_dim * hidden_dim
                           + hidden_dim * num_actions),
        transcendentals=batch * num_actions,
        bytes_accessed=(batch * num_inputs * state_fm.dtype.itemsize
                        + batch * num_actions * 4
                        + param_bytes),
    )

    # On v7x, pass megacore=True so the batch grid axis splits across both TCs.
    semantics = (pltpu.CORE_PARALLEL if megacore else pltpu.PARALLEL,)

    kernel = functools.partial(
        _policy_kernel,
        panel=panel, n_panels=n_panels,
        action_scale=ACTION_SCALE, action_bias=ACTION_BIAS,
    )

    return pl.pallas_call(
        kernel,
        out_shape=jax.ShapeDtypeStruct((num_actions, batch), jnp.float32),
        grid=grid,
        in_specs=in_specs,
        out_specs=out_spec,
        compiler_params=pltpu.CompilerParams(dimension_semantics=semantics),
        cost_estimate=cost,
    )(state_fm, w1, b1, w2, b2, w3, b3)


def deterministic_policy_forward(state, N_minusk, rN, params, *, tile_b=8192,
                                 megacore=False):
    """PyTorch-layout wrapper: state [B, num_inputs] -> mean [B, num_actions].

    N_minusk and rN are unused in forward(), matching the PyTorch module.
    The transposes here are thin XLA relayouts; callers that can keep data
    feature-major should call deterministic_policy_forward_fm directly.
    """
    del N_minusk, rN
    out_fm = deterministic_policy_forward_fm(state.T, params, tile_b=tile_b,
                                             megacore=megacore)
    return out_fm.T


def _xavier_uniform(key, out_features, in_features):
    bound = jnp.sqrt(6.0 / (in_features + out_features))
    return jax.random.uniform(key, (out_features, in_features), dtype=jnp.float32,
                              minval=-bound, maxval=bound)


def init_params(key, num_inputs, num_actions, hidden_dim):
    """PyTorch-native [out, in] weights, zero biases as [out, 1] columns."""
    k1, k2, k3 = jax.random.split(key, 3)
    w1 = _xavier_uniform(k1, hidden_dim, num_inputs)
    b1 = jnp.zeros((hidden_dim, 1), jnp.float32)
    w2 = _xavier_uniform(k2, hidden_dim, hidden_dim)
    b2 = jnp.zeros((hidden_dim, 1), jnp.float32)
    w3 = _xavier_uniform(k3, num_actions, hidden_dim)
    b3 = jnp.zeros((num_actions, 1), jnp.float32)
    return (w1, b1, w2, b2, w3, b3)


def cast_params_for_mxu(params, dtype):
    """Cast the weight matrices ONCE (outside the kernel); biases stay f32."""
    w1, b1, w2, b2, w3, b3 = params
    return (w1.astype(dtype), b1, w2.astype(dtype), b2, w3.astype(dtype), b3)


def _reference(state, params):
    w1, b1, w2, b2, w3, b3 = params
    h = jnp.maximum(state @ w1.T + b1[:, 0], 0.0)
    h = jnp.maximum(h @ w2.T + b2[:, 0], 0.0)
    return jnp.tanh(h @ w3.T + b3[:, 0]) * ACTION_SCALE + ACTION_BIAS


if __name__ == "__main__":
    key = jax.random.PRNGKey(0)
    k_param, k_state, k_state2 = jax.random.split(key, 3)

    batch = 8
    num_inputs = 16
    hidden_dim = 32
    num_actions = 8

    params = init_params(k_param, num_inputs, num_actions, hidden_dim)
    state = jax.random.normal(k_state, (batch, num_inputs), dtype=jnp.float32)
    # Unused forward args (present in the PyTorch signature).
    N_minusk = jnp.zeros((batch,), jnp.float32)
    rN = jnp.zeros((batch,), jnp.float32)

    # --- f32 path, single block ------------------------------------------
    mean = deterministic_policy_forward(state, N_minusk, rN, params)
    jax.block_until_ready(mean)
    ref = _reference(state, params)
    assert mean.shape == (batch, num_actions)
    assert jnp.allclose(mean, ref, atol=1e-5, rtol=1e-5)

    # --- ragged multi-step grid (no wrapper pad / output slice) -----------
    batch2 = 300
    state2 = jax.random.normal(k_state2, (batch2, num_inputs), dtype=jnp.float32)
    mean2 = deterministic_policy_forward(
        state2, jnp.zeros((batch2,)), jnp.zeros((batch2,)), params, tile_b=128)
    jax.block_until_ready(mean2)
    ref2 = _reference(state2, params)
    assert mean2.shape == (batch2, num_actions)
    assert jnp.allclose(mean2, ref2, atol=1e-5, rtol=1e-5)

    # --- bf16 MXU path: weights cast once outside, state bf16 in HBM -------
    params_bf16 = cast_params_for_mxu(params, jnp.bfloat16)
    mean_bf16 = deterministic_policy_forward(
        state.astype(jnp.bfloat16), N_minusk, rN, params_bf16)
    jax.block_until_ready(mean_bf16)
    assert mean_bf16.shape == (batch, num_actions)
    assert jnp.allclose(mean_bf16, ref, atol=3e-2, rtol=3e-2)

    print("KERNEL_OK")
</pallas_src>

<mosaic_0001>
module attributes {stable_mosaic.version = 11 : i64} {
  func.func @_policy_kernel(%arg0: i32, %arg1: memref<16x8xf32, #tpu.memory_space<vmem>>, %arg2: memref<32x16xf32, #tpu.memory_space<vmem>>, %arg3: memref<32x1xf32, #tpu.memory_space<vmem>>, %arg4: memref<32x32xf32, #tpu.memory_space<vmem>>, %arg5: memref<32x1xf32, #tpu.memory_space<vmem>>, %arg6: memref<8x32xf32, #tpu.memory_space<vmem>>, %arg7: memref<8x1xf32, #tpu.memory_space<vmem>>, %arg8: memref<8x8xf32, #tpu.memory_space<vmem>>) attributes {dimension_semantics = [#tpu.dimension_semantics<parallel>], iteration_bounds = array<i64: 1>, scalar_prefetch = 0 : i64, scratch_operands = 0 : i64, tpu.core_type = #tpu.core_type<tc>, window_params = [{transform_indices = @transform_0, window_bounds = array<i64: 16, 8>}, {pipeline_mode = #tpu.pipeline_mode<synchronous>, transform_indices = @transform_1, window_bounds = array<i64: 32, 16>}, {pipeline_mode = #tpu.pipeline_mode<synchronous>, transform_indices = @transform_2, window_bounds = array<i64: 32, 1>}, {pipeline_mode = #tpu.pipeline_mode<synchronous>, transform_indices = @transform_3, window_bounds = array<i64: 32, 32>}, {pipeline_mode = #tpu.pipeline_mode<synchronous>, transform_indices = @transform_4, window_bounds = array<i64: 32, 1>}, {pipeline_mode = #tpu.pipeline_mode<synchronous>, transform_indices = @transform_5, window_bounds = array<i64: 8, 32>}, {pipeline_mode = #tpu.pipeline_mode<synchronous>, transform_indices = @transform_6, window_bounds = array<i64: 8, 1>}, {transform_indices = @transform_7, window_bounds = array<i64: 8, 8>}]} {
    %c0 = arith.constant 0 : index
    %c0_0 = arith.constant 0 : index
    %0 = vector.load %arg2[%c0, %c0_0] : memref<32x16xf32, #tpu.memory_space<vmem>>, vector<32x16xf32>
    %c0_1 = arith.constant 0 : index
    %c0_2 = arith.constant 0 : index
    %1 = vector.load %arg4[%c0_1, %c0_2] : memref<32x32xf32, #tpu.memory_space<vmem>>, vector<32x32xf32>
    %c0_3 = arith.constant 0 : index
    %c0_4 = arith.constant 0 : index
    %2 = vector.load %arg6[%c0_3, %c0_4] : memref<8x32xf32, #tpu.memory_space<vmem>>, vector<8x32xf32>
    %c0_5 = arith.constant 0 : index
    %c0_6 = arith.constant 0 : index
    %3 = vector.load %arg3[%c0_5, %c0_6] : memref<32x1xf32, #tpu.memory_space<vmem>>, vector<32x1xf32>
    %c0_7 = arith.constant 0 : index
    %c0_8 = arith.constant 0 : index
    %4 = vector.load %arg5[%c0_7, %c0_8] : memref<32x1xf32, #tpu.memory_space<vmem>>, vector<32x1xf32>
    %c0_9 = arith.constant 0 : index
    %c0_10 = arith.constant 0 : index
    %5 = vector.load %arg7[%c0_9, %c0_10] : memref<8x1xf32, #tpu.memory_space<vmem>>, vector<8x1xf32>
    %c0_11 = arith.constant 0 : index
    %c0_12 = arith.constant 0 : index
    %6 = vector.load %arg1[%c0_11, %c0_12] : memref<16x8xf32, #tpu.memory_space<vmem>>, vector<16x8xf32>
    %cst = arith.constant dense<0.000000e+00> : vector<32x8xf32>
    %7 = tpu.matmul %0, %6, %cst {dimension_numbers = #tpu.dot_dimension_numbers<[1], [0], [0], [1], [0, 0, 1, 1], [], []>} : vector<32x16xf32>, vector<16x8xf32>, vector<32x8xf32> -> vector<32x8xf32>
    %8 = vector.broadcast %3 : vector<32x1xf32> to vector<32x8xf32>
    %9 = arith.addf %7, %8 : vector<32x8xf32>
    %cst_13 = arith.constant 0.000000e+00 : f32
    %10 = vector.broadcast %cst_13 : f32 to vector<32x8xf32>
    %11 = arith.maximumf %9, %10 : vector<32x8xf32>
    %cst_14 = arith.constant dense<0.000000e+00> : vector<32x8xf32>
    %12 = tpu.matmul %1, %11, %cst_14 {dimension_numbers = #tpu.dot_dimension_numbers<[1], [0], [0], [1], [0, 0, 1, 1], [], []>} : vector<32x32xf32>, vector<32x8xf32>, vector<32x8xf32> -> vector<32x8xf32>
    %13 = vector.broadcast %4 : vector<32x1xf32> to vector<32x8xf32>
    %14 = arith.addf %12, %13 : vector<32x8xf32>
    %cst_15 = arith.constant 0.000000e+00 : f32
    %15 = vector.broadcast %cst_15 : f32 to vector<32x8xf32>
    %16 = arith.maximumf %14, %15 : vector<32x8xf32>
    %cst_16 = arith.constant dense<0.000000e+00> : vector<8x8xf32>
    %17 = tpu.matmul %2, %16, %cst_16 {dimension_numbers = #tpu.dot_dimension_numbers<[1], [0], [0], [1], [0, 0, 1, 1], [], []>} : vector<8x32xf32>, vector<32x8xf32>, vector<8x8xf32> -> vector<8x8xf32>
    %18 = vector.broadcast %5 : vector<8x1xf32> to vector<8x8xf32>
    %19 = arith.addf %17, %18 : vector<8x8xf32>
    %20 = math.tanh %19 : vector<8x8xf32>
    %c0_17 = arith.constant 0 : index
    %c0_18 = arith.constant 0 : index
    %21 = vector.load %arg8[%c0_17, %c0_18] : memref<8x8xf32, #tpu.memory_space<vmem>>, vector<8x8xf32>
    tpu.vector_store %arg8[%c0_17, %c0_18], %20 {strides = array<i32>} : memref<8x8xf32, #tpu.memory_space<vmem>>, vector<8x8xf32>,
    return
  }
  func.func @transform_0(%arg0: i32) -> (i32, i32) {
    %c0_i32 = arith.constant 0 : i32
    %c0_i32_0 = arith.constant 0 : i32
    return %c0_i32, %arg0 : i32, i32
  }
  func.func @transform_1(%arg0: i32) -> (i32, i32) {
    %c0_i32 = arith.constant 0 : i32
    %c0_i32_0 = arith.constant 0 : i32
    %c0_i32_1 = arith.constant 0 : i32
    return %c0_i32, %c0_i32_0 : i32, i32
  }
  func.func @transform_2(%arg0: i32) -> (i32, i32) {
    %c0_i32 = arith.constant 0 : i32
    %c0_i32_0 = arith.constant 0 : i32
    %c0_i32_1 = arith.constant 0 : i32
    return %c0_i32, %c0_i32_0 : i32, i32
  }
  func.func @transform_3(%arg0: i32) -> (i32, i32) {
    %c0_i32 = arith.constant 0 : i32
    %c0_i32_0 = arith.constant 0 : i32
    %c0_i32_1 = arith.constant 0 : i32
    return %c0_i32, %c0_i32_0 : i32, i32
  }
  func.func @transform_4(%arg0: i32) -> (i32, i32) {
    %c0_i32 = arith.constant 0 : i32
    %c0_i32_0 = arith.constant 0 : i32
    %c0_i32_1 = arith.constant 0 : i32
    return %c0_i32, %c0_i32_0 : i32, i32
  }
  func.func @transform_5(%arg0: i32) -> (i32, i32) {
    %c0_i32 = arith.constant 0 : i32
    %c0_i32_0 = arith.constant 0 : i32
    %c0_i32_1 = arith.constant 0 : i32
    return %c0_i32, %c0_i32_0 : i32, i32
  }
  func.func @transform_6(%arg0: i32) -> (i32, i32) {
    %c0_i32 = arith.constant 0 : i32
    %c0_i32_0 = arith.constant 0 : i32
    %c0_i32_1 = arith.constant 0 : i32
    return %c0_i32, %c0_i32_0 : i32, i32
  }
  func.func @transform_7(%arg0: i32) -> (i32, i32) {
    %c0_i32 = arith.constant 0 : i32
    %c0_i32_0 = arith.constant 0 : i32
    return %c0_i32, %arg0 : i32, i32
  }
}

</mosaic_0001>

<llo_original>
// kernel: tpu_custom_call.1
$region0: #{tpu_custom_call.1}
  #allocation0 [shape = 'u32[]', space=smem, size = 0x4, offset = 0x4, fixed_abs, tag = 'smem constant byte address 0x4 - core index']
  #allocation1 [shape = 'u32[144,128]{1,0:T(1,128)}', space=vmem, size = 0x12000, scoped, tag = 'internal scratch']
  %s0 = inlined_call_operand.vmem [shape: f32[16,8], index: 0, kind: input, shape index: {}]
  %s1 = inlined_call_operand.vmem [shape: f32[32,16], index: 1, kind: input, shape index: {}]
  %s2 = inlined_call_operand.vmem [shape: f32[32,1], index: 2, kind: input, shape index: {}]
  %s3 = inlined_call_operand.vmem [shape: f32[32,32], index: 3, kind: input, shape index: {}]
  %s4 = inlined_call_operand.vmem [shape: f32[32,1], index: 4, kind: input, shape index: {}]
  %s5 = inlined_call_operand.vmem [shape: f32[8,32], index: 5, kind: input, shape index: {}]
  %s6 = inlined_call_operand.vmem [shape: f32[8,1], index: 6, kind: input, shape index: {}]
  %s7 = inlined_call_operand.hbm [shape: f32[8,8], index: 7, kind: output, shape index: {}]
  %s8 = sld [smem:[#allocation0]]
  $region38: #{tpu_custom_call.1} parent=0
    _
  %s10 = ssub.s32 1, %s8
  %s11 = scalar_select 0, %s10, %s8
  $region1: #{tpu_custom_call.1} parent=0
    #allocation2 [shape = 'u8[4096]{0}', space=vmem, size = 0x1000, scoped, tag = 'output window, operand 0, single buffered']
    #allocation3 [shape = 's32[1]{0}', space=sflag, size = 0x4, scoped, tag = 'scoped memory for tpu_custom_call.1']
    %12 = vsyncpa [#allocation3], 0
    // Predicated region
    $region2: #{tpu_custom_call.1} parent=1 // pred_check
      _
    $region3: #{tpu_custom_call.1} parent=1 // pred_check_branch
      %14 = sbr.rel (0) target = $region5
    $region4: #{tpu_custom_call.1} parent=1 // pred_region
      _
    $region5: #{tpu_custom_call.1} parent=1 // pred_fallthru
      _
    // Predicated region
    $region6: #{tpu_custom_call.1} parent=1 // pred_check
      _
    $region7: #{tpu_custom_call.1} parent=1 // pred_check_branch
      %16 = sbr.rel (0) target = $region9
    $region8: #{tpu_custom_call.1} parent=1 // pred_region
      _
    $region9: #{tpu_custom_call.1} parent=1 // pred_fallthru
      _
    // Predicated region
    $region10: #{tpu_custom_call.1} parent=1 // pred_check
      _
    $region11: #{tpu_custom_call.1} parent=1 // pred_check_branch
      %18 = sbr.rel (0) target = $region13
    $region12: #{tpu_custom_call.1} parent=1 // pred_region
      _
    $region13: #{tpu_custom_call.1} parent=1 // pred_fallthru
      _
    // Predicated region
    $region14: #{tpu_custom_call.1} parent=1 // pred_check
      _
    $region15: #{tpu_custom_call.1} parent=1 // pred_check_branch
      %20 = sbr.rel (0) target = $region17
    $region16: #{tpu_custom_call.1} parent=1 // pred_region
      _
    $region17: #{tpu_custom_call.1} parent=1 // pred_fallthru
      _
    // Predicated region
    $region18: #{tpu_custom_call.1} parent=1 // pred_check
      _
    $region19: #{tpu_custom_call.1} parent=1 // pred_check_branch
      %22 = sbr.rel (0) target = $region21
    $region20: #{tpu_custom_call.1} parent=1 // pred_region
      _
    $region21: #{tpu_custom_call.1} parent=1 // pred_fallthru
      _
    // Predicated region
    $region22: #{tpu_custom_call.1} parent=1 // pred_check
      _
    $region23: #{tpu_custom_call.1} parent=1 // pred_check_branch
      %24 = sbr.rel (0) target = $region25
    $region24: #{tpu_custom_call.1} parent=1 // pred_region
      _
    $region25: #{tpu_custom_call.1} parent=1 // pred_fallthru
      _
    // Predicated region
    $region26: #{tpu_custom_call.1} parent=1 // pred_check
      _
    $region27: #{tpu_custom_call.1} parent=1 // pred_check_branch
      %26 = sbr.rel (0) target = $region29
    $region28: #{tpu_custom_call.1} parent=1 // pred_region
      _
    $region29: #{tpu_custom_call.1} parent=1 // pred_fallthru
      _
    %v27 = vld [vmem:[%s1] sm:$0xff]
    %v28 = vld [vmem:[%s1 + $0x8] sm:$0xff]
    %v29 = vld [vmem:[%s1 + $0x10] sm:$0xff]
    %v30 = vld [vmem:[%s1 + $0x18] sm:$0xff]
    %v31 = vld [vmem:[%s3] sm:$0xff]
    %v32 = vld [vmem:[%s3 + $0x8] sm:$0xff]
    %v33 = vld [vmem:[%s3 + $0x10] sm:$0xff]
    %v34 = vld [vmem:[%s3 + $0x18] sm:$0xff]
    %v35 = vld [vmem:[%s5] sm:$0xff]
    %v36 = vld [vmem:[%s2] sm:$0xff]
    %v37 = vld [vmem:[%s2 + $0x8] sm:$0xff]
    %v38 = vld [vmem:[%s2 + $0x10] sm:$0xff]
    %v39 = vld [vmem:[%s2 + $0x18] sm:$0xff]
    %v40 = vld [vmem:[%s4] sm:$0xff]
    %v41 = vld [vmem:[%s4 + $0x8] sm:$0xff]
    %v42 = vld [vmem:[%s4 + $0x10] sm:$0xff]
    %v43 = vld [vmem:[%s4 + $0x18] sm:$0xff]
    %v44 = vld [vmem:[%s6] sm:$0xff]
    %v45 = vld [vmem:[%s0] sm:$0xff]
    %v46 = vld [vmem:[%s0 + $0x8] sm:$0xff]
    %48 = vset.pattern.permute.xlu0 0
    %49 = vperm.xlu0 %48, %v36
    %v50 = vpop.permute.xlu0 %49
    %53 = vset.pattern.permute.xlu0 0
    %54 = vperm.xlu0 %53, %v37
    %v55 = vpop.permute.xlu0 %54
    %58 = vset.pattern.permute.xlu0 0
    %59 = vperm.xlu0 %58, %v38
    %v60 = vpop.permute.xlu0 %59
    %63 = vset.pattern.permute.xlu0 0
    %64 = vperm.xlu0 %63, %v39
    %v65 = vpop.permute.xlu0 %64
    %vm67 = vcmask 130048
    %v69 = vsel %vm67, %v27, 0
    %v72 = vsel %vm67, %v28, 0
    %v75 = vsel %vm67, %v29, 0
    %v78 = vsel %vm67, %v30, 0
    %80 = vmatprep.subr.mxu0 0.0
    %81 = vmatpush1.msra.mxu0 0.0
    %82 = vmatprep.subr.mxu0 0.0
    %83 = vmatpush1.msra.mxu0 0.0
    %84 = vmatprep.subr.mxu0 0.0
    %85 = vmatpush1.msra.mxu0 0.0
    %86 = vmatprep.subr.mxu0 0.0
    %87 = vmatpush1.msra.mxu0 0.0
    %88 = vmatprep.subr.mxu0 0.0
    %89 = vmatpush1.msra.mxu0 0.0
    %90 = vmatprep.subr.mxu0 0.0
    %91 = vmatpush1.msra.mxu0 0.0
    %92 = vmatprep.subr.mxu0 0.0
    %93 = vmatpush1.msra.mxu0 0.0
    %94 = vmatprep.subr.mxu0 0.0
    %95 = vmatpush1.msra.mxu0 0.0
    %96 = vmatprep.subr.mxu0 0.0
    %97 = vmatpush1.msra.mxu0 0.0
    %98 = vmatprep.subr.mxu0 0.0
    %99 = vmatpush1.msra.mxu0 0.0
    %100 = vmatprep.subr.mxu0 0.0
    %101 = vmatpush1.msra.mxu0 0.0
    %102 = vmatprep.subr.mxu0 0.0
    %103 = vmatpush1.msra.mxu0 0.0
    %104 = vmatprep.subr.mxu0 0.0
    %105 = vmatpush1.msra.mxu0 0.0
    %106 = vmatprep.subr.mxu0 0.0
    %107 = vmatpush1.msra.mxu0 0.0
    %108 = vmatprep.subr.mxu0 0.0
    %109 = vmatpush1.msra.mxu0 %v46
    %110 = vmatprep.subr.mxu0 0.0
    %111 = vmatpush1.msra.mxu0 %v45
    %112 = vmatprep.subr.mxu0 0.0
    %113 = vmatpush2.msra.mxu0 0.0
    %114 = vmatprep.subr.mxu0 0.0
    %115 = vmatpush2.msra.mxu0 0.0
    %116 = vmatprep.subr.mxu0 0.0
    %117 = vmatpush2.msra.mxu0 0.0
    %118 = vmatprep.subr.mxu0 0.0
    %119 = vmatpush2.msra.mxu0 0.0
    %120 = vmatprep.subr.mxu0 0.0
    %121 = vmatpush2.msra.mxu0 0.0
    %122 = vmatprep.subr.mxu0 0.0
    %123 = vmatpush2.msra.mxu0 0.0
    %124 = vmatprep.subr.mxu0 0.0
    %125 = vmatpush2.msra.mxu0 0.0
    %126 = vmatprep.subr.mxu0 0.0
    %127 = vmatpush2.msra.mxu0 0.0
    %128 = vmatprep.subr.mxu0 0.0
    %129 = vmatpush2.msra.mxu0 0.0
    %130 = vmatprep.subr.mxu0 0.0
    %131 = vmatpush2.msra.mxu0 0.0
    %132 = vmatprep.subr.mxu0 0.0
    %133 = vmatpush2.msra.mxu0 0.0
    %134 = vmatprep.subr.mxu0 0.0
    %135 = vmatpush2.msra.mxu0 0.0
    %136 = vmatprep.subr.mxu0 0.0
    %137 = vmatpush2.msra.mxu0 0.0
    %138 = vmatprep.subr.mxu0 0.0
    %139 = vmatpush2.msra.mxu0 0.0
    %140 = vmatprep.subr.mxu0 0.0
    %141 = vmatpush2.msra.mxu0 0.0
    %142 = vmatprep.subr.mxu0 0.0
    %143 = vmatpush2.msra.mxu0 0.0
    %144 = vmatprep.mubr.f32.mxu0 0.0
    %145 = vmatmul.mubr.f32.gmra.mxu0 %v69
    %v146 = vpop.f32.mrf.mxu0
    %v147 = vadd.f32 %v50, %v146
    %v148 = vpop.f32.mrf.mxu0
    %149 = vmatprep.mubr.f32.mxu0 0.0
    %150 = vmatmul.mubr.f32.gmra.mxu0 %v72
    %v151 = vpop.f32.mrf.mxu0
    %v152 = vadd.f32 %v55, %v151
    %v153 = vpop.f32.mrf.mxu0
    %154 = vmatprep.mubr.f32.mxu0 0.0
    %155 = vmatmul.mubr.f32.gmra.mxu0 %v75
    %v156 = vpop.f32.mrf.mxu0
    %v157 = vadd.f32 %v60, %v156
    %v158 = vpop.f32.mrf.mxu0
    %159 = vmatprep.mubr.f32.mxu0 0.0
    %160 = vmatmul.mubr.f32.gmra.mxu0 %v78
    %v161 = vpop.f32.mrf.mxu0
    %v162 = vadd.f32 %v65, %v161
    %v163 = vpop.f32.mrf.mxu0
    %164 = vdwg.mxu0
    %v165 = vmax.f32 %v147, 0.0
    %v166 = vmax.f32 %v152, 0.0
    %v167 = vmax.f32 %v157, 0.0
    %v168 = vmax.f32 %v162, 0.0
    %170 = vset.pattern.permute.xlu0 0
    %171 = vperm.xlu0 %170, %v40
    %v172 = vpop.permute.xlu0 %171
    %175 = vset.pattern.permute.xlu0 0
    %176 = vperm.xlu0 %175, %v41
    %v177 = vpop.permute.xlu0 %176
    %180 = vset.pattern.permute.xlu0 0
    %181 = vperm.xlu0 %180, %v42
    %v182 = vpop.permute.xlu0 %181
    %185 = vset.pattern.permute.xlu0 0
    %186 = vperm.xlu0 %185, %v43
    %v187 = vpop.permute.xlu0 %186
    %vm189 = vcmask 261120
    %v191 = vsel %vm189, %v31, 0
    %v194 = vsel %vm189, %v32, 0
    %v197 = vsel %vm189, %v33, 0
    %v200 = vsel %vm189, %v34, 0
    %202 = vmatprep.subr.mxu0 0.0
    %203 = vmatpush1.msra.mxu0 0.0
    %204 = vmatprep.subr.mxu0 0.0
    %205 = vmatpush1.msra.mxu0 0.0
    %206 = vmatprep.subr.mxu0 0.0
    %207 = vmatpush1.msra.mxu0 0.0
    %208 = vmatprep.subr.mxu0 0.0
    %209 = vmatpush1.msra.mxu0 0.0
    %210 = vmatprep.subr.mxu0 0.0
    %211 = vmatpush1.msra.mxu0 0.0
    %212 = vmatprep.subr.mxu0 0.0
    %213 = vmatpush1.msra.mxu0 0.0
    %214 = vmatprep.subr.mxu0 0.0
    %215 = vmatpush1.msra.mxu0 0.0
    %216 = vmatprep.subr.mxu0 0.0
    %217 = vmatpush1.msra.mxu0 0.0
    %218 = vmatprep.subr.mxu0 0.0
    %219 = vmatpush1.msra.mxu0 0.0
    %220 = vmatprep.subr.mxu0 0.0
    %221 = vmatpush1.msra.mxu0 0.0
    %222 = vmatprep.subr.mxu0 0.0
    %223 = vmatpush1.msra.mxu0 0.0
    %224 = vmatprep.subr.mxu0 0.0
    %225 = vmatpush1.msra.mxu0 0.0
    %226 = vmatprep.subr.mxu0 0.0
    %227 = vmatpush1.msra.mxu0 %v168
    %228 = vmatprep.subr.mxu0 0.0
    %229 = vmatpush1.msra.mxu0 %v167
    %230 = vmatprep.subr.mxu0 0.0
    %231 = vmatpush1.msra.mxu0 %v166
    %232 = vmatprep.subr.mxu0 0.0
    %233 = vmatpush1.msra.mxu0 %v165
    %234 = vmatprep.subr.mxu0 0.0
    %235 = vmatpush2.msra.mxu0 0.0
    %236 = vmatprep.subr.mxu0 0.0
    %237 = vmatpush2.msra.mxu0 0.0
    %238 = vmatprep.subr.mxu0 0.0
    %239 = vmatpush2.msra.mxu0 0.0
    %240 = vmatprep.subr.mxu0 0.0
    %241 = vmatpush2.msra.mxu0 0.0
    %242 = vmatprep.subr.mxu0 0.0
    %243 = vmatpush2.msra.mxu0 0.0
    %244 = vmatprep.subr.mxu0 0.0
    %245 = vmatpush2.msra.mxu0 0.0
    %246 = vmatprep.subr.mxu0 0.0
    %247 = vmatpush2.msra.mxu0 0.0
    %248 = vmatprep.subr.mxu0 0.0
    %249 = vmatpush2.msra.mxu0 0.0
    %250 = vmatprep.subr.mxu0 0.0
    %251 = vmatpush2.msra.mxu0 0.0
    %252 = vmatprep.subr.mxu0 0.0
    %253 = vmatpush2.msra.mxu0 0.0
    %254 = vmatprep.subr.mxu0 0.0
    %255 = vmatpush2.msra.mxu0 0.0
    %256 = vmatprep.subr.mxu0 0.0
    %257 = vmatpush2.msra.mxu0 0.0
    %258 = vmatprep.subr.mxu0 0.0
    %259 = vmatpush2.msra.mxu0 0.0
    %260 = vmatprep.subr.mxu0 0.0
    %261 = vmatpush2.msra.mxu0 0.0
    %262 = vmatprep.subr.mxu0 0.0
    %263 = vmatpush2.msra.mxu0 0.0
    %264 = vmatprep.subr.mxu0 0.0
    %265 = vmatpush2.msra.mxu0 0.0
    %266 = vmatprep.mubr.f32.mxu0 0.0
    %267 = vmatmul.mubr.f32.gmra.mxu0 %v191
    %v268 = vpop.f32.mrf.mxu0
    %v269 = vadd.f32 %v172, %v268
    %v270 = vpop.f32.mrf.mxu0
    %271 = vmatprep.mubr.f32.mxu0 0.0
    %272 = vmatmul.mubr.f32.gmra.mxu0 %v194
    %v273 = vpop.f32.mrf.mxu0
    %v274 = vadd.f32 %v177, %v273
    %v275 = vpop.f32.mrf.mxu0
    %276 = vmatprep.mubr.f32.mxu0 0.0
    %277 = vmatmul.mubr.f32.gmra.mxu0 %v197
    %v278 = vpop.f32.mrf.mxu0
    %v279 = vadd.f32 %v182, %v278
    %v280 = vpop.f32.mrf.mxu0
    %281 = vmatprep.mubr.f32.mxu0 0.0
    %282 = vmatmul.mubr.f32.gmra.mxu0 %v200
    %v283 = vpop.f32.mrf.mxu0
    %v284 = vadd.f32 %v187, %v283
    %v285 = vpop.f32.mrf.mxu0
    %286 = vdwg.mxu0
    %v287 = vmax.f32 %v269, 0.0
    %v288 = vmax.f32 %v274, 0.0
    %v289 = vmax.f32 %v279, 0.0
    %v290 = vmax.f32 %v284, 0.0
    %292 = vset.pattern.permute.xlu0 0
    %293 = vperm.xlu0 %292, %v44
    %v294 = vpop.permute.xlu0 %293
    %v297 = vsel %vm189, %v35, 0
    %299 = vmatprep.subr.mxu0 0.0
    %300 = vmatpush1.msra.mxu0 0.0
    %301 = vmatprep.subr.mxu0 0.0
    %302 = vmatpush1.msra.mxu0 0.0
    %303 = vmatprep.subr.mxu0 0.0
    %304 = vmatpush1.msra.mxu0 0.0
    %305 = vmatprep.subr.mxu0 0.0
    %306 = vmatpush1.msra.mxu0 0.0
    %307 = vmatprep.subr.mxu0 0.0
    %308 = vmatpush1.msra.mxu0 0.0
    %309 = vmatprep.subr.mxu0 0.0
    %310 = vmatpush1.msra.mxu0 0.0
    %311 = vmatprep.subr.mxu0 0.0
    %312 = vmatpush1.msra.mxu0 0.0
    %313 = vmatprep.subr.mxu0 0.0
    %314 = vmatpush1.msra.mxu0 0.0
    %315 = vmatprep.subr.mxu0 0.0
    %316 = vmatpush1.msra.mxu0 0.0
    %317 = vmatprep.subr.mxu0 0.0
    %318 = vmatpush1.msra.mxu0 0.0
    %319 = vmatprep.subr.mxu0 0.0
    %320 = vmatpush1.msra.mxu0 0.0
    %321 = vmatprep.subr.mxu0 0.0
    %322 = vmatpush1.msra.mxu0 0.0
    %323 = vmatprep.subr.mxu0 0.0
    %324 = vmatpush1.msra.mxu0 %v290
    %325 = vmatprep.subr.mxu0 0.0
    %326 = vmatpush1.msra.mxu0 %v289
    %327 = vmatprep.subr.mxu0 0.0
    %328 = vmatpush1.msra.mxu0 %v288
    %329 = vmatprep.subr.mxu0 0.0
    %330 = vmatpush1.msra.mxu0 %v287
    %331 = vmatprep.subr.mxu0 0.0
    %332 = vmatpush2.msra.mxu0 0.0
    %333 = vmatprep.subr.mxu0 0.0
    %334 = vmatpush2.msra.mxu0 0.0
    %335 = vmatprep.subr.mxu0 0.0
    %336 = vmatpush2.msra.mxu0 0.0
    %337 = vmatprep.subr.mxu0 0.0
    %338 = vmatpush2.msra.mxu0 0.0
    %339 = vmatprep.subr.mxu0 0.0
    %340 = vmatpush2.msra.mxu0 0.0
    %341 = vmatprep.subr.mxu0 0.0
    %342 = vmatpush2.msra.mxu0 0.0
    %343 = vmatprep.subr.mxu0 0.0
    %344 = vmatpush2.msra.mxu0 0.0
    %345 = vmatprep.subr.mxu0 0.0
    %346 = vmatpush2.msra.mxu0 0.0
    %347 = vmatprep.subr.mxu0 0.0
    %348 = vmatpush2.msra.mxu0 0.0
    %349 = vmatprep.subr.mxu0 0.0
    %350 = vmatpush2.msra.mxu0 0.0
    %351 = vmatprep.subr.mxu0 0.0
    %352 = vmatpush2.msra.mxu0 0.0
    %353 = vmatprep.subr.mxu0 0.0
    %354 = vmatpush2.msra.mxu0 0.0
    %355 = vmatprep.subr.mxu0 0.0
    %356 = vmatpush2.msra.mxu0 0.0
    %357 = vmatprep.subr.mxu0 0.0
    %358 = vmatpush2.msra.mxu0 0.0
    %359 = vmatprep.subr.mxu0 0.0
    %360 = vmatpush2.msra.mxu0 0.0
    %361 = vmatprep.subr.mxu0 0.0
    %362 = vmatpush2.msra.mxu0 0.0
    %363 = vmatprep.mubr.f32.mxu0 0.0
    %364 = vmatmul.mubr.f32.gmra.mxu0 %v297
    %v365 = vpop.f32.mrf.mxu0
    %v366 = vadd.f32 %v294, %v365
    %v367 = vpop.f32.mrf.mxu0
    %368 = vdwg.mxu0
    %v369 = vtanh.pop %v366
    %vm370 = vcmask 64512
    %371 = vst.msk [vmem:[#allocation2] sm:$0xff] %vm370, %v369
    // Predicated region
    $region30: #{tpu_custom_call.1} parent=1 // pred_check
      _
    $region31: #{tpu_custom_call.1} parent=1 // pred_check_branch
      %373 = sbr.rel (0) target = $region33
    $region32: #{tpu_custom_call.1} parent=1 // pred_region
      %s375 = ssub.s32 128, 128
      %376 = vsyncadd [#allocation3], %s375
      %s378 = sshll.u32 [#allocation2], 4
      %s379 = int_to_ptr.vmem [resolvable:$true] %s378
      %381 = dma.vmem_to_hbm [thread:$0]  %s379, 128, %s7, [#allocation3]
    $region33: #{tpu_custom_call.1} parent=1 // pred_fallthru
      _
    // Predicated region
    $region34: #{tpu_custom_call.1} parent=1 // pred_check
      _
    $region35: #{tpu_custom_call.1} parent=1 // pred_check_branch
      %383 = sbr.rel (0) target = $region37
    $region36: #{tpu_custom_call.1} parent=1 // pred_region
      %384 = dma.done [#allocation3], 128
    $region37: #{tpu_custom_call.1} parent=1 // pred_fallthru
      _
    %385 = vsyncpa [#allocation3], 1

</llo_original>
